<compile_context>
chip_gen: v7x
topology: tpu7x:2x2x1
jax: 0.10.0
libtpu: 0.0.40
codegen_flags: <defaults>
</compile_context>

<pallas_src>
import math

import jax
import jax.numpy as jnp
from jax.experimental import pallas as pl
from jax.experimental.pallas import tpu as pltpu


def _round_up(n, m):
    return ((n + m - 1) // m) * m


def _vmem_capacity_bytes():
    try:
        return int(pltpu.get_tpu_info().vmem_capacity_bytes)
    except Exception:
        return 64 * 1024 * 1024  # conservative fallback (v7x per-TensorCore)


def dce_kernel(x_ref, c2_ref, cs_ref, out_ref, fs_ref):
    """out = x @ (2*centers) - |x|^2 - |centers|^2 for one (batch, class) tile.

    x_ref  : (TB, D)   batch tile (f32 or bf16); constant across class tiles
    c2_ref : (D, TN)   pre-scaled centers tile (2 * centers)
    cs_ref : (1, TN)   per-class squared norms (f32, from unscaled centers)
    out_ref: (TB, TN)  output tile (-dist)
    fs_ref : (TB, 1)   f32 scratch holding |x|^2, computed once per batch tile
    """
    # |x|^2 only needs recomputing when the batch tile changes; the class axis
    # is the inner grid dim, so j == 0 marks a fresh batch tile.
    @pl.when(pl.program_id(1) == 0)
    def _():
        xf = x_ref[...].astype(jnp.float32)
        fs_ref[...] = jnp.sum(xf * xf, axis=1, keepdims=True)

    # 2.0 scale was folded into c2 in the wrapper; accumulate in f32 on MXU.
    fic = jnp.dot(x_ref[...], c2_ref[...], preferred_element_type=jnp.float32)
    out_ref[...] = (fic - fs_ref[...] - cs_ref[...]).astype(out_ref.dtype)


def _choose_class_tile(D, C, in_bytes, out_bytes, budget):
    """Return (Cp, TN): padded class extent and class tile (TN == Cp => 1 class step)."""
    if C <= 256:
        # Small class counts: keep C unpadded (block == full array extent).
        # Padding e.g. C=8 -> 128 would multiply output HBM writes ~16x.
        return C, C
    cp_full = _round_up(C, 128)

    def fits(tn, tb):
        need = (2 * D * tn * in_bytes        # centers tile (double-buffered)
                + 2 * 8 * tn * 4             # |centers|^2 row (sublane-padded)
                + 2 * tb * D * in_bytes      # x tile
                + 2 * tb * tn * out_bytes)   # output tile
        return need <= budget

    if fits(cp_full, 256):
        return cp_full, cp_full
    for tn in (4096, 2048, 1024, 512, 256, 128):
        if tn < cp_full and fits(tn, 256):
            return _round_up(C, tn), tn
    return _round_up(C, 128), 128


def _choose_batch_tile(Bp, D, TN, in_bytes, out_bytes, budget):
    """Return (TB, Bp_pad). Prefers divisor tiles (no pad copy of x)."""
    fixed = 2 * D * TN * in_bytes + 2 * 8 * TN * 4
    tb = 1024
    while tb > 8:
        need = (fixed + 2 * tb * D * in_bytes + 2 * tb * TN * out_bytes
                + tb * 128 * 4)  # fs scratch (lane-padded)
        if need <= budget:
            break
        tb //= 2
    tb = max(tb, 8)
    # Cap TB so large batches give >= 4 grid steps: megacore sharding on v7x's
    # 2 TCs and DMA/compute overlap; per-step overhead is only ~0.35 us.
    while tb > 256 and Bp // tb < 4:
        tb //= 2
    # Prefer a divisor of Bp (no jnp.pad HBM copy of x) unless it would shrink
    # the tile drastically for a large batch.
    tb_div = tb
    while tb_div > 8 and Bp % tb_div:
        tb_div //= 2
    if Bp % tb_div == 0 and (tb_div >= 64 or Bp <= 1024 or tb_div * 8 >= tb):
        return tb_div, Bp
    return tb, _round_up(Bp, tb)


def dce_loss_forward(x, centers, *, dot_dtype=jnp.float32, out_dtype=jnp.float32):
    """Pallas forward for dce_loss: returns (centers, -dist).

    dot_dtype=jnp.bfloat16: halves operand DMA / resident centers footprint and
      uses the native bf16 MXU path on v6e/v7x (opt-in: loses mantissa before
      the cancellation in 2*x@c - |x|^2 - |c|^2; validate tolerance).
    out_dtype=jnp.bfloat16: halves the output writeback (accumulation stays f32).
    """
    B, D = x.shape
    D2, C = centers.shape
    assert D == D2, "feat_dim mismatch"

    x32 = x.astype(jnp.float32)
    c32 = centers.astype(jnp.float32)

    # Hoisted once per call: |centers|^2 from the *unscaled f32* centers, and
    # the 2.0 scale folded into the matmul operand (exact: power-of-two scale).
    cs = jnp.sum(c32 * c32, axis=0, keepdims=True)        # (1, C), f32
    c2 = (2.0 * c32).astype(dot_dtype)                    # (D, C)

    in_bytes = jnp.dtype(dot_dtype).itemsize
    out_bytes = jnp.dtype(out_dtype).itemsize

    capacity = _vmem_capacity_bytes()
    budget = int(capacity * 0.60)        # ~38 MiB on v7x, ~77 MiB on v5e/v6e

    Cp, TN = _choose_class_tile(D, C, in_bytes, out_bytes, budget)
    Bp = _round_up(B, 8)
    TB, Bp_pad = _choose_batch_tile(Bp, D, TN, in_bytes, out_bytes, budget)

    # Operand prep: cast once in the wrapper; pad only when unavoidable.
    x_in = x32.astype(dot_dtype)
    if Bp_pad != B:
        x_in = jnp.pad(x_in, ((0, Bp_pad - B), (0, 0)))
    c2_in, cs_in = c2, cs
    if Cp != C:
        c2_in = jnp.pad(c2, ((0, 0), (0, Cp - C)))
        cs_in = jnp.pad(cs, ((0, 0), (0, Cp - C)))

    grid = (Bp_pad // TB, Cp // TN)
    buf_bytes = (2 * TB * D * in_bytes + 2 * D * TN * in_bytes
                 + 2 * 8 * TN * 4 + 2 * TB * TN * out_bytes + TB * 128 * 4)
    vmem_limit = int(min(capacity - capacity // 4,           # 25% headroom
                         max(32 * 1024 * 1024, buf_bytes + (4 << 20))))

    neg_dist_p = pl.pallas_call(
        dce_kernel,
        out_shape=jax.ShapeDtypeStruct((Bp_pad, Cp), out_dtype),
        grid=grid,
        in_specs=[
            pl.BlockSpec((TB, D), lambda i, j: (i, 0)),   # x: constant over class axis
            pl.BlockSpec((D, TN), lambda i, j: (0, j)),   # 2*centers tile
            pl.BlockSpec((1, TN), lambda i, j: (0, j)),   # |centers|^2 tile
        ],
        out_specs=pl.BlockSpec((TB, TN), lambda i, j: (i, j)),
        scratch_shapes=[pltpu.VMEM((TB, 1), jnp.float32)],
        compiler_params=pltpu.CompilerParams(
            dimension_semantics=("parallel", "arbitrary"),
            vmem_limit_bytes=vmem_limit,
        ),
    )(x_in, c2_in, cs_in)

    neg_dist = neg_dist_p[:B, :C]
    # Module returns (self.centers, -dist)
    return centers, neg_dist


def reference_forward(x, centers):
    fs = jnp.sum(x ** 2, axis=1, keepdims=True)
    cs = jnp.sum(centers ** 2, axis=0, keepdims=True)
    fic = 2.0 * (x @ centers)
    dist = fs + cs - fic
    return centers, -dist


if __name__ == "__main__":
    key = jax.random.PRNGKey(0)
    k_x, k_c, k_x2 = jax.random.split(key, 3)

    n_classes = 8
    feat_dim = 32
    batch = 8

    # Deterministic stand-in for nn.init.kaiming_normal_ on (feat_dim, n_classes):
    # PyTorch default fan_in = size(1) = n_classes, gain = sqrt(2).
    std = math.sqrt(2.0) / math.sqrt(n_classes)
    centers = std * jax.random.normal(k_c, (feat_dim, n_classes), dtype=jnp.float32)
    x = jax.random.normal(k_x, (batch, feat_dim), dtype=jnp.float32)

    c_out, neg_dist = dce_loss_forward(x, centers)
    jax.block_until_ready(neg_dist)

    c_ref, neg_dist_ref = reference_forward(x, centers)
    assert neg_dist.shape == (batch, n_classes), "bad output shape"
    assert jnp.allclose(neg_dist, neg_dist_ref, atol=1e-4, rtol=1e-4), "mismatch vs reference"
    assert jnp.allclose(c_out, c_ref), "centers mismatch"

    # Second shape: non-power-of-two batch exercises the divisor-tile path
    # (no jnp.pad of x) and a multi-step batch grid with the same kernel.
    x2 = jax.random.normal(k_x2, (24, feat_dim), dtype=jnp.float32)
    _, neg_dist2 = dce_loss_forward(x2, centers)
    jax.block_until_ready(neg_dist2)
    _, neg_dist2_ref = reference_forward(x2, centers)
    assert neg_dist2.shape == (24, n_classes), "bad output shape (case 2)"
    assert jnp.allclose(neg_dist2, neg_dist2_ref, atol=1e-4, rtol=1e-4), "mismatch (case 2)"

    print("KERNEL_OK")
</pallas_src>

<mosaic_0001>
module attributes {stable_mosaic.version = 11 : i64} {
  func.func @dce_kernel(%arg0: i32, %arg1: i32, %arg2: memref<8x32xf32, #tpu.memory_space<vmem>>, %arg3: memref<32x8xf32, #tpu.memory_space<vmem>>, %arg4: memref<1x8xf32, #tpu.memory_space<vmem>>, %arg5: memref<8x8xf32, #tpu.memory_space<vmem>>, %arg6: memref<8x1xf32, #tpu.memory_space<vmem>>) attributes {dimension_semantics = [#tpu.dimension_semantics<parallel>, #tpu.dimension_semantics<arbitrary>], iteration_bounds = array<i64: 1, 1>, scalar_prefetch = 0 : i64, scratch_operands = 1 : i64, tpu.core_type = #tpu.core_type<tc>, window_params = [{transform_indices = @transform_0, window_bounds = array<i64: 8, 32>}, {transform_indices = @transform_1, window_bounds = array<i64: 32, 8>}, {transform_indices = @transform_2, window_bounds = array<i64: 1, 8>}, {transform_indices = @transform_3, window_bounds = array<i64: 8, 8>}]} {
    %c0_i32 = arith.constant 0 : i32
    %0 = arith.cmpi eq, %arg1, %c0_i32 : i32
    %1 = arith.extui %0 : i1 to i32
    %c0_i32_0 = arith.constant 0 : i32
    %2 = arith.cmpi ne, %1, %c0_i32_0 : i32
    scf.if %2 {
      %c0_10 = arith.constant 0 : index
      %c0_11 = arith.constant 0 : index
      %13 = vector.load %arg2[%c0_10, %c0_11] : memref<8x32xf32, #tpu.memory_space<vmem>>, vector<8x32xf32>
      %14 = arith.mulf %13, %13 : vector<8x32xf32>
      %cst_12 = arith.constant dense<0.000000e+00> : vector<8xf32>
      %15 = vector.multi_reduction <add>, %14, %cst_12 [1] : vector<8x32xf32> to vector<8xf32>
      %16 = vector.shape_cast %15 : vector<8xf32> to vector<8x1xf32>
      %c0_13 = arith.constant 0 : index
      %c0_14 = arith.constant 0 : index
      %17 = vector.load %arg6[%c0_13, %c0_14] : memref<8x1xf32, #tpu.memory_space<vmem>>, vector<8x1xf32>
      tpu.vector_store %arg6[%c0_13, %c0_14], %16 {strides = array<i32>} : memref<8x1xf32, #tpu.memory_space<vmem>>, vector<8x1xf32>,
    } else {
    }
    %c0 = arith.constant 0 : index
    %c0_1 = arith.constant 0 : index
    %3 = vector.load %arg2[%c0, %c0_1] : memref<8x32xf32, #tpu.memory_space<vmem>>, vector<8x32xf32>
    %c0_2 = arith.constant 0 : index
    %c0_3 = arith.constant 0 : index
    %4 = vector.load %arg3[%c0_2, %c0_3] : memref<32x8xf32, #tpu.memory_space<vmem>>, vector<32x8xf32>
    %cst = arith.constant dense<0.000000e+00> : vector<8x8xf32>
    %5 = tpu.matmul %3, %4, %cst {dimension_numbers = #tpu.dot_dimension_numbers<[1], [0], [0], [1], [0, 0, 1, 1], [], []>} : vector<8x32xf32>, vector<32x8xf32>, vector<8x8xf32> -> vector<8x8xf32>
    %c0_4 = arith.constant 0 : index
    %c0_5 = arith.constant 0 : index
    %6 = vector.load %arg6[%c0_4, %c0_5] : memref<8x1xf32, #tpu.memory_space<vmem>>, vector<8x1xf32>
    %7 = vector.broadcast %6 : vector<8x1xf32> to vector<8x8xf32>
    %8 = arith.subf %5, %7 : vector<8x8xf32>
    %c0_6 = arith.constant 0 : index
    %c0_7 = arith.constant 0 : index
    %9 = vector.load %arg4[%c0_6, %c0_7] : memref<1x8xf32, #tpu.memory_space<vmem>>, vector<1x8xf32>
    %10 = vector.broadcast %9 : vector<1x8xf32> to vector<8x8xf32>
    %11 = arith.subf %8, %10 : vector<8x8xf32>
    %c0_8 = arith.constant 0 : index
    %c0_9 = arith.constant 0 : index
    %12 = vector.load %arg5[%c0_8, %c0_9] : memref<8x8xf32, #tpu.memory_space<vmem>>, vector<8x8xf32>
    tpu.vector_store %arg5[%c0_8, %c0_9], %11 {strides = array<i32>} : memref<8x8xf32, #tpu.memory_space<vmem>>, vector<8x8xf32>,
    return
  }
  func.func @transform_0(%arg0: i32, %arg1: i32) -> (i32, i32) {
    %c0_i32 = arith.constant 0 : i32
    %c0_i32_0 = arith.constant 0 : i32
    return %arg0, %c0_i32 : i32, i32
  }
  func.func @transform_1(%arg0: i32, %arg1: i32) -> (i32, i32) {
    %c0_i32 = arith.constant 0 : i32
    %c0_i32_0 = arith.constant 0 : i32
    return %c0_i32, %arg1 : i32, i32
  }
  func.func @transform_2(%arg0: i32, %arg1: i32) -> (i32, i32) {
    %c0_i32 = arith.constant 0 : i32
    %c0_i32_0 = arith.constant 0 : i32
    return %c0_i32, %arg1 : i32, i32
  }
  func.func @transform_3(%arg0: i32, %arg1: i32) -> (i32, i32) {
    %c0_i32 = arith.constant 0 : i32
    return %arg0, %arg1 : i32, i32
  }
}

</mosaic_0001>

<llo_original>
// kernel: tpu_custom_call.1
$region0: #{tpu_custom_call.1}
  #allocation0 [shape = 'u32[]', space=smem, size = 0x4, offset = 0x4, fixed_abs, tag = 'smem constant byte address 0x4 - core index']
  #allocation1 [shape = 'u32[144,128]{1,0:T(1,128)}', space=vmem, size = 0x12000, scoped, tag = 'internal scratch']
  #allocation2 [shape = 'f32[8,1]{1,0:T(8,128)}', space=vmem, size = 0x1000, scoped, tag = 'scratch operand']
  %s0 = inlined_call_operand.vmem [shape: f32[8,32], index: 0, kind: input, shape index: {}]
  %s1 = inlined_call_operand.vmem [shape: f32[32,8], index: 1, kind: input, shape index: {}]
  %s2 = inlined_call_operand.vmem [shape: f32[1,8], index: 2, kind: input, shape index: {}]
  %s3 = inlined_call_operand.hbm [shape: f32[8,8], index: 3, kind: output, shape index: {}]
  %s4 = sld [smem:[#allocation0]]
  $region26: #{tpu_custom_call.1} parent=0
    _
  %s6 = ssub.s32 1, %s4
  %s7 = scalar_select 0, %s6, %s4
  $region1: #{tpu_custom_call.1} parent=0
    #allocation3 [shape = 'u8[4096]{0}', space=vmem, size = 0x1000, scoped, tag = 'output window, operand 0, single buffered']
    #allocation4 [shape = 's32[1]{0}', space=sflag, size = 0x4, scoped, tag = 'scoped memory for tpu_custom_call.1']
    %8 = vsyncpa [#allocation4], 0
    // Predicated region
    $region2: #{tpu_custom_call.1} parent=1 // pred_check
      _
    $region3: #{tpu_custom_call.1} parent=1 // pred_check_branch
      %10 = sbr.rel (0) target = $region5
    $region4: #{tpu_custom_call.1} parent=1 // pred_region
      _
    $region5: #{tpu_custom_call.1} parent=1 // pred_fallthru
      _
    // Predicated region
    $region6: #{tpu_custom_call.1} parent=1 // pred_check
      _
    $region7: #{tpu_custom_call.1} parent=1 // pred_check_branch
      %12 = sbr.rel (0) target = $region9
    $region8: #{tpu_custom_call.1} parent=1 // pred_region
      _
    $region9: #{tpu_custom_call.1} parent=1 // pred_fallthru
      _
    // Predicated region
    $region10: #{tpu_custom_call.1} parent=1 // pred_check
      _
    $region11: #{tpu_custom_call.1} parent=1 // pred_check_branch
      %14 = sbr.rel (0) target = $region13
    $region12: #{tpu_custom_call.1} parent=1 // pred_region
      _
    $region13: #{tpu_custom_call.1} parent=1 // pred_fallthru
      _
    %p15 = scmp.eq.s32.totalorder 0, 0
    // Predicated region
    $region14: #{tpu_custom_call.1} parent=1 // pred_check
      %p16 = pneg %p15
    $region15: #{tpu_custom_call.1} parent=1 // pred_check_branch
      %18 = sbr.rel (%p16) target = $region17
    $region16: #{tpu_custom_call.1} parent=1 // pred_region
      %v19 = vld [vmem:[%s0] sm:$0xff]
      %v20 = vmul.f32 %v19, %v19
      %vm21 = vcmask 261120
      %v22 = vsel %vm21, %v20, 0.0
      %23 = vadd.xlane.f32.xlu0 %v22
      %v24 = vpop.xlane.xlu0 %23
      %vm25 = vcmask 7168
      %26 = vst.msk [vmem:[#allocation2] sm:$0xff] %vm25, %v24
    $region17: #{tpu_custom_call.1} parent=1 // pred_fallthru
      _
    %v27 = vld [vmem:[%s0] sm:$0xff]
    %v28 = vld [vmem:[%s1] sm:$0xff]
    %v29 = vld [vmem:[%s1 + $0x8] sm:$0xff]
    %v30 = vld [vmem:[%s1 + $0x10] sm:$0xff]
    %v31 = vld [vmem:[%s1 + $0x18] sm:$0xff]
    %vm32 = vcmask 261120
    %v34 = vsel %vm32, %v27, 0
    %36 = vmatprep.subr.mxu0 0.0
    %37 = vmatpush1.msra.mxu0 %v28
    %38 = vmatprep.subr.mxu0 0.0
    %39 = vmatpush1.msra.mxu0 %v29
    %40 = vmatprep.subr.mxu0 0.0
    %41 = vmatpush1.msra.mxu0 %v30
    %42 = vmatprep.subr.mxu0 0.0
    %43 = vmatpush1.msra.mxu0 %v31
    %44 = vmatprep.subr.mxu0 0.0
    %45 = vmatpush1.msra.mxu0 0.0
    %46 = vmatprep.subr.mxu0 0.0
    %47 = vmatpush1.msra.mxu0 0.0
    %48 = vmatprep.subr.mxu0 0.0
    %49 = vmatpush1.msra.mxu0 0.0
    %50 = vmatprep.subr.mxu0 0.0
    %51 = vmatpush1.msra.mxu0 0.0
    %52 = vmatprep.subr.mxu0 0.0
    %53 = vmatpush1.msra.mxu0 0.0
    %54 = vmatprep.subr.mxu0 0.0
    %55 = vmatpush1.msra.mxu0 0.0
    %56 = vmatprep.subr.mxu0 0.0
    %57 = vmatpush1.msra.mxu0 0.0
    %58 = vmatprep.subr.mxu0 0.0
    %59 = vmatpush1.msra.mxu0 0.0
    %60 = vmatprep.subr.mxu0 0.0
    %61 = vmatpush1.msra.mxu0 0.0
    %62 = vmatprep.subr.mxu0 0.0
    %63 = vmatpush1.msra.mxu0 0.0
    %64 = vmatprep.subr.mxu0 0.0
    %65 = vmatpush1.msra.mxu0 0.0
    %66 = vmatprep.subr.mxu0 0.0
    %67 = vmatpush1.msra.mxu0 0.0
    %68 = vmatprep.subr.mxu0 0.0
    %69 = vmatpush1.msra.mxu0 0.0
    %70 = vmatprep.subr.mxu0 0.0
    %71 = vmatpush1.msra.mxu0 0.0
    %72 = vmatprep.subr.mxu0 0.0
    %73 = vmatpush1.msra.mxu0 0.0
    %74 = vmatprep.subr.mxu0 0.0
    %75 = vmatpush1.msra.mxu0 0.0
    %76 = vmatprep.subr.mxu0 0.0
    %77 = vmatpush1.msra.mxu0 0.0
    %78 = vmatprep.subr.mxu0 0.0
    %79 = vmatpush1.msra.mxu0 0.0
    %80 = vmatprep.subr.mxu0 0.0
    %81 = vmatpush1.msra.mxu0 0.0
    %82 = vmatprep.subr.mxu0 0.0
    %83 = vmatpush1.msra.mxu0 0.0
    %84 = vmatprep.subr.mxu0 0.0
    %85 = vmatpush1.msra.mxu0 0.0
    %86 = vmatprep.subr.mxu0 0.0
    %87 = vmatpush1.msra.mxu0 0.0
    %88 = vmatprep.subr.mxu0 0.0
    %89 = vmatpush1.msra.mxu0 0.0
    %90 = vmatprep.subr.mxu0 0.0
    %91 = vmatpush1.msra.mxu0 0.0
    %92 = vmatprep.subr.mxu0 0.0
    %93 = vmatpush1.msra.mxu0 0.0
    %94 = vmatprep.subr.mxu0 0.0
    %95 = vmatpush1.msra.mxu0 0.0
    %96 = vmatprep.subr.mxu0 0.0
    %97 = vmatpush1.msra.mxu0 0.0
    %98 = vmatprep.subr.mxu0 0.0
    %99 = vmatpush1.msra.mxu0 0.0
    %100 = vmatprep.mubr.f32.mxu0 0.0
    %101 = vmatmul.mubr.f32.gmra.mrb[0].mxu0 %v34
    %v102 = vpop.f32.mrb[0].mxu0
    %v103 = vadd.f32 0.0, %v102
    %v104 = vpop.f32.mrb[0].mxu0
    %105 = vdwg.mxu0
    %v106 = vld [vmem:[#allocation2] sm:$0xff]
    %108 = vset.pattern.permute.xlu0 0
    %109 = vperm.xlu0 %108, %v106
    %v110 = vpop.permute.xlu0 %109
    %v112 = vsub.f32 %v103, %v110
    %v113 = vld [vmem:[%s2] sm:$0x1]
    %v115 = vlaneseq
    %v116 = vshrl.u32 %v115, 7
    %v117 = vsub.s32 0, %v116
    %v118 = vrot.slane %v113, %v117
    %v120 = vsub.f32 %v112, %v118
    %vm121 = vcmask 64512
    %122 = vst.msk [vmem:[#allocation3] sm:$0xff] %vm121, %v120
    // Predicated region
    $region18: #{tpu_custom_call.1} parent=1 // pred_check
      _
    $region19: #{tpu_custom_call.1} parent=1 // pred_check_branch
      %124 = sbr.rel (0) target = $region21
    $region20: #{tpu_custom_call.1} parent=1 // pred_region
      %s126 = ssub.s32 128, 128
      %127 = vsyncadd [#allocation4], %s126
      %s129 = sshll.u32 [#allocation3], 4
      %s130 = int_to_ptr.vmem [resolvable:$true] %s129
      %132 = dma.vmem_to_hbm [thread:$0]  %s130, 128, %s3, [#allocation4]
    $region21: #{tpu_custom_call.1} parent=1 // pred_fallthru
      _
    // Predicated region
    $region22: #{tpu_custom_call.1} parent=1 // pred_check
      _
    $region23: #{tpu_custom_call.1} parent=1 // pred_check_branch
      %134 = sbr.rel (0) target = $region25
    $region24: #{tpu_custom_call.1} parent=1 // pred_region
      %135 = dma.done [#allocation4], 128
    $region25: #{tpu_custom_call.1} parent=1 // pred_fallthru
      _
    %136 = vsyncpa [#allocation4], 1

</llo_original>
